<compile_context>
chip_gen: v6e
topology: v6e:2x2x1
jax: 0.10.0
libtpu: 0.0.40
codegen_flags: <defaults>
</compile_context>

<pallas_src>
import functools

import jax
import jax.numpy as jnp
from jax.experimental import pallas as pl
from jax.experimental.pallas import tpu as pltpu

_LANE = 128
_SUBLANE = 8
_TARGET_BLOCK_BYTES = 8 * 1024 * 1024    # ~8 MiB per input buffer (double-buffered)
_VMEM_LIMIT_BYTES = 32 * 1024 * 1024     # >= 2 x block + slack; safe on v5e/v6e/v7x
_SMALL_N_FALLBACK = 256 * 1024           # below this, kernel launch overhead dominates


def _tensorcores_per_chip() -> int:
    """Best-effort TensorCore count (2 on v7x, 1 on v5e/v6e). Defaults to 1."""
    try:
        info = pltpu.get_tpu_info()
    except Exception:
        return 1
    for attr in ("num_cores", "core_count", "num_tensorcores", "tensorcores_per_chip"):
        v = getattr(info, attr, None)
        if isinstance(v, int) and v >= 1:
            return v
    return 1


def _one_sided_kernel(x_ref, o_ref, acc_ref, *, block_rows, total_rows):
    c = pl.program_id(0)                  # TensorCore split (parallel axis)
    i = pl.program_id(1)                  # reduction step within the split
    n_i = pl.num_programs(1)

    @pl.when(i == 0)
    def _():
        acc_ref[...] = jnp.zeros_like(acc_ref)

    logical_block = c * n_i + i
    # Fully in-bounds AND not a clamped duplicate -> unmasked fast path.
    is_interior = (logical_block + 1) * block_rows <= total_rows

    def _accumulate(val):
        # Pure per-vreg VPU adds into the (8, 128) accumulator; the tiny
        # sublane + lane collapse is deferred to the wrapper.
        acc_ref[...] += jnp.sum(val.reshape(-1, _SUBLANE, _LANE), axis=0)

    @pl.when(is_interior)
    def _():
        tile = x_ref[...].astype(jnp.float32)
        _accumulate(jnp.minimum(tile, 0.0))      # min(x, 0) == -relu(-x)

    @pl.when(jnp.logical_not(is_interior))
    def _():
        tile = x_ref[...].astype(jnp.float32)
        val = jnp.minimum(tile, 0.0)
        # Mask rows past the logical extent (partial last block and clamped
        # duplicate blocks).  Select AFTER the min so stale/NaN VMEM garbage
        # cannot propagate into the accumulator.
        row = jax.lax.broadcasted_iota(jnp.int32, val.shape, 0)
        keep = (logical_block * block_rows + row) < total_rows
        _accumulate(jnp.where(keep, val, 0.0))

    @pl.when(i == n_i - 1)
    def _():
        o_ref[0] = acc_ref[...]


def one_sided(x, *, min_pallas_elements=_SMALL_N_FALLBACK):
    """JAX/Pallas equivalent of ONE_SIDED.forward: -relu(-x).mean()."""
    n = x.size
    total_rows = n // _LANE

    if n < min_pallas_elements or total_rows == 0:
        # Tiny input: plain JAX is strictly faster than a kernel launch.
        return (-jnp.mean(jnp.maximum(-x.astype(jnp.float32), 0.0))).astype(x.dtype)

    flat = x.reshape(-1)                       # metadata-only for contiguous input
    tail = n - total_rows * _LANE
    if tail:
        # <128-element tail summed in plain JAX (avoids an O(n) jnp.pad copy).
        tail_sum = jnp.sum(jnp.minimum(flat[total_rows * _LANE:].astype(jnp.float32), 0.0))
        body = flat[: total_rows * _LANE]
    else:
        tail_sum = jnp.float32(0.0)
        body = flat
    x2d = body.reshape(total_rows, _LANE)

    # Block sized by bytes (dtype-aware), kept a multiple of 8 sublanes.
    itemsize = jnp.dtype(x.dtype).itemsize
    target_rows = max(_SUBLANE,
                      (_TARGET_BLOCK_BYTES // (_LANE * itemsize)) // _SUBLANE * _SUBLANE)
    aligned_rows = (total_rows // _SUBLANE) * _SUBLANE if total_rows >= _SUBLANE else _SUBLANE
    block_rows = min(target_rows, aligned_rows)

    num_blocks = -(-total_rows // block_rows)
    # Split across TCs only when the chip actually has more than one (v7x).
    num_splits = max(1, min(2, _tensorcores_per_chip(), num_blocks))
    blocks_per_split = -(-num_blocks // num_splits)
    grid = (num_splits, blocks_per_split)

    def in_map(c, i):
        # Clamp so the DMA never starts past the array; clamped duplicates are
        # fully masked in-kernel via the logical (unclamped) block index.
        return (jnp.minimum(c * blocks_per_split + i, num_blocks - 1), 0)

    partials = pl.pallas_call(
        functools.partial(_one_sided_kernel,
                          block_rows=block_rows,
                          total_rows=total_rows),
        out_shape=jax.ShapeDtypeStruct((num_splits, _SUBLANE, _LANE), jnp.float32),
        grid_spec=pltpu.PrefetchScalarGridSpec(
            num_scalar_prefetch=0,
            grid=grid,
            in_specs=[pl.BlockSpec((block_rows, _LANE), in_map)],
            out_specs=pl.BlockSpec((1, _SUBLANE, _LANE), lambda c, i: (c, 0, 0)),
            scratch_shapes=[pltpu.VMEM((_SUBLANE, _LANE), jnp.float32)],
        ),
        compiler_params=pltpu.CompilerParams(
            dimension_semantics=("parallel", "arbitrary"),
            vmem_limit_bytes=_VMEM_LIMIT_BYTES),
        cost_estimate=pl.CostEstimate(
            flops=2 * n, transcendentals=0,
            bytes_accessed=x.nbytes + num_splits * _SUBLANE * _LANE * 4),
    )(x2d)

    # sum(min(x, 0)) / n  ==  -relu(-x).mean()   (tiny finishing work in JAX)
    total = jnp.sum(partials) + tail_sum
    return (total / jnp.float32(n)).astype(x.dtype)


if __name__ == "__main__":
    key = jax.random.PRNGKey(0)
    k1, k2 = jax.random.split(key)

    # Small NCHW input consistent with the module; force the Pallas path so the
    # kernel itself is exercised (the default threshold would use the fallback).
    x = jax.random.normal(k1, (2, 4, 16, 16), dtype=jnp.float32)
    result = jax.block_until_ready(one_sided(x, min_pallas_elements=0))
    ref = -jnp.mean(jnp.maximum(-x, 0.0))
    assert jnp.allclose(result, ref, atol=1e-5, rtol=1e-5), (result, ref)

    # Irregular size (n % 128 != 0): exercises boundary masking + JAX tail sum.
    x_odd = jax.random.normal(k2, (3, 5, 7, 11), dtype=jnp.float32)
    result_odd = jax.block_until_ready(one_sided(x_odd, min_pallas_elements=0))
    ref_odd = -jnp.mean(jnp.maximum(-x_odd, 0.0))
    assert jnp.allclose(result_odd, ref_odd, atol=1e-5, rtol=1e-5), (result_odd, ref_odd)

    # Default path (small-input fallback) sanity check.
    result_fb = jax.block_until_ready(one_sided(x))
    assert jnp.allclose(result_fb, ref, atol=1e-5, rtol=1e-5), (result_fb, ref)

    print("KERNEL_OK")
</pallas_src>

<mosaic_0001>
module attributes {stable_mosaic.version = 11 : i64} {
  func.func @_one_sided_kernel(%arg0: i32, %arg1: i32, %arg2: memref<16x128xf32, #tpu.memory_space<vmem>>, %arg3: memref<1x8x128xf32, #tpu.memory_space<vmem>>, %arg4: memref<8x128xf32, #tpu.memory_space<vmem>>) attributes {dimension_semantics = [#tpu.dimension_semantics<parallel>, #tpu.dimension_semantics<arbitrary>], iteration_bounds = array<i64: 1, 1>, scalar_prefetch = 0 : i64, scratch_operands = 1 : i64, tpu.core_type = #tpu.core_type<tc>, window_params = [{transform_indices = @transform_0, window_bounds = array<i64: 16, 128>}, {transform_indices = @transform_1, window_bounds = array<i64: 1, 8, 128>}]} {
    %c0_i32 = arith.constant 0 : i32
    %0 = arith.cmpi eq, %arg1, %c0_i32 : i32
    %1 = arith.extui %0 : i1 to i32
    %c0_i32_0 = arith.constant 0 : i32
    %2 = arith.cmpi ne, %1, %c0_i32_0 : i32
    scf.if %2 {
      %cst = arith.constant 0.000000e+00 : f32
      %16 = vector.broadcast %cst : f32 to vector<8x128xf32>
      %c0 = arith.constant 0 : index
      %c0_7 = arith.constant 0 : index
      %17 = vector.load %arg4[%c0, %c0_7] : memref<8x128xf32, #tpu.memory_space<vmem>>, vector<8x128xf32>
      tpu.vector_store %arg4[%c0, %c0_7], %16 {strides = array<i32>} : memref<8x128xf32, #tpu.memory_space<vmem>>, vector<8x128xf32>,
    } else {
    }
    %c1_i32 = arith.constant 1 : i32
    %3 = arith.muli %arg0, %c1_i32 : i32
    %4 = arith.addi %3, %arg1 : i32
    %c1_i32_1 = arith.constant 1 : i32
    %5 = arith.addi %4, %c1_i32_1 : i32
    %c16_i32 = arith.constant 16 : i32
    %6 = arith.muli %5, %c16_i32 : i32
    %c16_i32_2 = arith.constant 16 : i32
    %7 = arith.cmpi sle, %6, %c16_i32_2 : i32
    %8 = arith.extui %7 : i1 to i32
    %c0_i32_3 = arith.constant 0 : i32
    %9 = arith.cmpi ne, %8, %c0_i32_3 : i32
    scf.if %9 {
      %c0 = arith.constant 0 : index
      %c0_7 = arith.constant 0 : index
      %16 = vector.load %arg2[%c0, %c0_7] : memref<16x128xf32, #tpu.memory_space<vmem>>, vector<16x128xf32>
      %cst = arith.constant 0.000000e+00 : f32
      %17 = vector.broadcast %cst : f32 to vector<16x128xf32>
      %18 = arith.minimumf %16, %17 : vector<16x128xf32>
      %c0_8 = arith.constant 0 : index
      %c0_9 = arith.constant 0 : index
      %19 = vector.load %arg4[%c0_8, %c0_9] : memref<8x128xf32, #tpu.memory_space<vmem>>, vector<8x128xf32>
      %20 = vector.shape_cast %18 : vector<16x128xf32> to vector<2x8x128xf32>
      %cst_10 = arith.constant dense<0.000000e+00> : vector<8x128xf32>
      %21 = vector.multi_reduction <add>, %20, %cst_10 [0] : vector<2x8x128xf32> to vector<8x128xf32>
      %22 = arith.addf %19, %21 : vector<8x128xf32>
      %c0_11 = arith.constant 0 : index
      %c0_12 = arith.constant 0 : index
      %23 = vector.load %arg4[%c0_11, %c0_12] : memref<8x128xf32, #tpu.memory_space<vmem>>, vector<8x128xf32>
      tpu.vector_store %arg4[%c0_11, %c0_12], %22 {strides = array<i32>} : memref<8x128xf32, #tpu.memory_space<vmem>>, vector<8x128xf32>,
    } else {
    }
    %true = arith.constant true
    %10 = arith.xori %7, %true : i1
    %11 = arith.extui %10 : i1 to i32
    %c0_i32_4 = arith.constant 0 : i32
    %12 = arith.cmpi ne, %11, %c0_i32_4 : i32
    scf.if %12 {
      %c0 = arith.constant 0 : index
      %c0_7 = arith.constant 0 : index
      %16 = vector.load %arg2[%c0, %c0_7] : memref<16x128xf32, #tpu.memory_space<vmem>>, vector<16x128xf32>
      %cst = arith.constant 0.000000e+00 : f32
      %17 = vector.broadcast %cst : f32 to vector<16x128xf32>
      %18 = arith.minimumf %16, %17 : vector<16x128xf32>
      %19 = tpu.iota {dimensions = array<i32: 0>} : vector<16x128xi32>
      %c16_i32_8 = arith.constant 16 : i32
      %20 = arith.muli %4, %c16_i32_8 : i32
      %21 = vector.broadcast %20 : i32 to vector<16x128xi32>
      %22 = arith.addi %21, %19 : vector<16x128xi32>
      %c16_i32_9 = arith.constant 16 : i32
      %23 = vector.broadcast %c16_i32_9 : i32 to vector<16x128xi32>
      %24 = arith.cmpi slt, %22, %23 : vector<16x128xi32>
      %cst_10 = arith.constant 0.000000e+00 : f32
      %25 = vector.broadcast %cst_10 : f32 to vector<16x128xf32>
      %26 = arith.select %24, %18, %25 : vector<16x128xi1>, vector<16x128xf32>
      %c0_11 = arith.constant 0 : index
      %c0_12 = arith.constant 0 : index
      %27 = vector.load %arg4[%c0_11, %c0_12] : memref<8x128xf32, #tpu.memory_space<vmem>>, vector<8x128xf32>
      %28 = vector.shape_cast %26 : vector<16x128xf32> to vector<2x8x128xf32>
      %cst_13 = arith.constant dense<0.000000e+00> : vector<8x128xf32>
      %29 = vector.multi_reduction <add>, %28, %cst_13 [0] : vector<2x8x128xf32> to vector<8x128xf32>
      %30 = arith.addf %27, %29 : vector<8x128xf32>
      %c0_14 = arith.constant 0 : index
      %c0_15 = arith.constant 0 : index
      %31 = vector.load %arg4[%c0_14, %c0_15] : memref<8x128xf32, #tpu.memory_space<vmem>>, vector<8x128xf32>
      tpu.vector_store %arg4[%c0_14, %c0_15], %30 {strides = array<i32>} : memref<8x128xf32, #tpu.memory_space<vmem>>, vector<8x128xf32>,
    } else {
    }
    %c0_i32_5 = arith.constant 0 : i32
    %13 = arith.cmpi eq, %arg1, %c0_i32_5 : i32
    %14 = arith.extui %13 : i1 to i32
    %c0_i32_6 = arith.constant 0 : i32
    %15 = arith.cmpi ne, %14, %c0_i32_6 : i32
    scf.if %15 {
      %c0 = arith.constant 0 : index
      %c0_7 = arith.constant 0 : index
      %16 = vector.load %arg4[%c0, %c0_7] : memref<8x128xf32, #tpu.memory_space<vmem>>, vector<8x128xf32>
      %c0_8 = arith.constant 0 : index
      %c0_9 = arith.constant 0 : index
      %c0_10 = arith.constant 0 : index
      %17 = vector.load %arg3[%c0_8, %c0_9, %c0_10] : memref<1x8x128xf32, #tpu.memory_space<vmem>>, vector<1x8x128xf32>
      %18 = vector.shape_cast %17 : vector<1x8x128xf32> to vector<8x128xf32>
      %19 = vector.shape_cast %16 : vector<8x128xf32> to vector<1x8x128xf32>
      tpu.vector_store %arg3[%c0_8, %c0_9, %c0_10], %19 {strides = array<i32>} : memref<1x8x128xf32, #tpu.memory_space<vmem>>, vector<1x8x128xf32>,
    } else {
    }
    return
  }
  func.func @transform_0(%arg0: i32, %arg1: i32) -> (i32, i32) {
    %c1_i32 = arith.constant 1 : i32
    %0 = arith.muli %arg0, %c1_i32 : i32
    %1 = arith.addi %0, %arg1 : i32
    %c0_i32 = arith.constant 0 : i32
    %2 = arith.minsi %1, %c0_i32 : i32
    %c0_i32_0 = arith.constant 0 : i32
    %c0_i32_1 = arith.constant 0 : i32
    return %2, %c0_i32_0 : i32, i32
  }
  func.func @transform_1(%arg0: i32, %arg1: i32) -> (i32, i32, i32) {
    %c0_i32 = arith.constant 0 : i32
    %c0_i32_0 = arith.constant 0 : i32
    %c0_i32_1 = arith.constant 0 : i32
    return %arg0, %c0_i32, %c0_i32_0 : i32, i32, i32
  }
}

</mosaic_0001>

<llo_original>
// kernel: tpu_custom_call.1
$region0: #{tpu_custom_call.1}
  #allocation0 [shape = 'u32[]', space=smem, size = 0x4, offset = 0x4, fixed_abs, tag = 'smem constant byte address 0x4 - core index']
  #allocation1 [shape = 'u32[144,128]{1,0:T(1,128)}', space=vmem, size = 0x12000, scoped, tag = 'internal scratch']
  #allocation2 [shape = 'f32[8,128]{1,0:T(8,128)}', space=vmem, size = 0x1000, scoped, tag = 'scratch operand']
  %s0 = inlined_call_operand.hbm [shape: f32[16,128], index: 0, kind: input, shape index: {}]
  %s1 = inlined_call_operand.hbm [shape: f32[1,8,128], index: 1, kind: output, shape index: {}]
  %s2 = sld [smem:[#allocation0]]
  $region34: #{tpu_custom_call.1} parent=0
    _
  %s4 = ssub.s32 1, %s2
  %s5 = scalar_select 0, %s4, %s2
  $region1: #{tpu_custom_call.1} parent=0
    #allocation3 [shape = 'u8[8192]{0}', space=vmem, size = 0x2000, scoped, tag = 'input window, operand 0, single buffered']
    #allocation4 [shape = 's32[1]{0}', space=sflag, size = 0x4, scoped, tag = 'scoped memory for tpu_custom_call.1']
    #allocation5 [shape = 's32[1]{0}', space=sflag, size = 0x4, scoped, tag = 'scoped memory for tpu_custom_call.1']
    #allocation6 [shape = 'u8[4096]{0}', space=vmem, size = 0x1000, scoped, tag = 'output window, operand 0, single buffered']
    %6 = vsyncpa [#allocation4], 0
    %7 = vsyncpa [#allocation5], 0
    // Predicated region
    $region2: #{tpu_custom_call.1} parent=1 // pred_check
      _
    $region3: #{tpu_custom_call.1} parent=1 // pred_check_branch
      %9 = sbr.rel (0) target = $region5
    $region4: #{tpu_custom_call.1} parent=1 // pred_region
      %s10 = sadd.s32 0, 0
      %p11 = scmp.lt.s32.totalorder %s10, 0
      %s12 = scalar_select %p11, %s10, 0
      %s13 = smul.u32 2, %s12
      %s15 = ssub.s32 256, 256
      %16 = vsyncadd [#allocation4], %s15
      %s17 = smul.addr %s13, 128
      %s18 = scalar_lea.hbm %s0, %s17
      %s19 = sshll.u32 [#allocation3], 4
      %s20 = int_to_ptr.vmem [resolvable:$true] %s19
      %25 = dma.hbm_to_vmem [thread:$0]  %s18, 256, %s20, [#allocation4], 128, 128, 8
    $region5: #{tpu_custom_call.1} parent=1 // pred_fallthru
      _
    // Predicated region
    $region6: #{tpu_custom_call.1} parent=1 // pred_check
      _
    $region7: #{tpu_custom_call.1} parent=1 // pred_check_branch
      %27 = sbr.rel (0) target = $region9
    $region8: #{tpu_custom_call.1} parent=1 // pred_region
      %28 = dma.done [#allocation4], 256
    $region9: #{tpu_custom_call.1} parent=1 // pred_fallthru
      _
    %s29 = sadd.s32 0, 0
    %p30 = scmp.lt.s32.totalorder %s29, 0
    %s31 = scalar_select %p30, %s29, 0
    %s32 = smul.u32 2, %s31
    %p33 = scmp.eq.s32.totalorder 0, 0
    // Predicated region
    $region10: #{tpu_custom_call.1} parent=1 // pred_check
      %p34 = pneg %p33
    $region11: #{tpu_custom_call.1} parent=1 // pred_check_branch
      %36 = sbr.rel (%p34) target = $region13
    $region12: #{tpu_custom_call.1} parent=1 // pred_region
      %37 = vst [vmem:[#allocation2] sm:$0xff] 0.0
    $region13: #{tpu_custom_call.1} parent=1 // pred_fallthru
      _
    %s38 = sadd.s32 0, 0
    %s39 = sadd.s32 %s38, 1
    %s40 = smul.u32 %s39, 16
    %p41 = scmp.le.s32.totalorder %s40, 16
    // Predicated region
    $region14: #{tpu_custom_call.1} parent=1 // pred_check
      %p42 = pneg %p41
    $region15: #{tpu_custom_call.1} parent=1 // pred_check_branch
      %44 = sbr.rel (%p42) target = $region17
    $region16: #{tpu_custom_call.1} parent=1 // pred_region
      %v45 = vld [vmem:[#allocation3] sm:$0xff]
      %v46 = vld [vmem:[#allocation3 + $0x8] sm:$0xff]
      %v47 = vmin.f32 %v45, 0.0
      %v48 = vmin.f32 %v46, 0.0
      %v49 = vld [vmem:[#allocation2] sm:$0xff]
      %v50 = vadd.f32 %v47, %v48
      %v51 = vadd.f32 %v49, %v50
      %52 = vst [vmem:[#allocation2] sm:$0xff] %v51
    $region17: #{tpu_custom_call.1} parent=1 // pred_fallthru
      _
    %p53 = scmp.gt.s32.totalorder %s40, 16
    // Predicated region
    $region18: #{tpu_custom_call.1} parent=1 // pred_check
      %p54 = pneg %p53
    $region19: #{tpu_custom_call.1} parent=1 // pred_check_branch
      %56 = sbr.rel (%p54) target = $region21
    $region20: #{tpu_custom_call.1} parent=1 // pred_region
      %v57 = vld [vmem:[#allocation3] sm:$0xff]
      %v58 = vld [vmem:[#allocation3 + $0x8] sm:$0xff]
      %v59 = vmin.f32 %v57, 0.0
      %v60 = vmin.f32 %v58, 0.0
      %v61 = vlaneseq
      %v62 = vshrl.u32 %v61, 7
      %v63 = vadd.s32 %v62, 8
      %s64 = smul.u32 %s38, 16
      %v65 = vstv %s64
      %v66 = vadd.s32 %v65, %v62
      %v67 = vadd.s32 %v65, %v63
      %vm68 = vcmp.lt.s32.totalorder %v66, 16
      %vm69 = vcmp.lt.s32.totalorder %v67, 16
      %v70 = vsel %vm68, %v59, 0.0
      %v71 = vsel %vm69, %v60, 0.0
      %v72 = vld [vmem:[#allocation2] sm:$0xff]
      %v73 = vadd.f32 %v70, %v71
      %v74 = vadd.f32 %v72, %v73
      %75 = vst [vmem:[#allocation2] sm:$0xff] %v74
    $region21: #{tpu_custom_call.1} parent=1 // pred_fallthru
      _
    // Predicated region
    $region22: #{tpu_custom_call.1} parent=1 // pred_check
      %p76 = pneg %p33
    $region23: #{tpu_custom_call.1} parent=1 // pred_check_branch
      %78 = sbr.rel (%p76) target = $region25
    $region24: #{tpu_custom_call.1} parent=1 // pred_region
      %v79 = vld [vmem:[#allocation2] sm:$0xff]
      %80 = vst [vmem:[#allocation6] sm:$0xff] %v79
    $region25: #{tpu_custom_call.1} parent=1 // pred_fallthru
      _
    // Predicated region
    $region26: #{tpu_custom_call.1} parent=1 // pred_check
      _
    $region27: #{tpu_custom_call.1} parent=1 // pred_check_branch
      %82 = sbr.rel (0) target = $region29
    $region28: #{tpu_custom_call.1} parent=1 // pred_region
      %s84 = ssub.s32 128, 128
      %85 = vsyncadd [#allocation5], %s84
      %s87 = sshll.u32 [#allocation6], 4
      %s88 = int_to_ptr.vmem [resolvable:$true] %s87
      %90 = dma.vmem_to_hbm [thread:$0]  %s88, 128, %s1, [#allocation5]
    $region29: #{tpu_custom_call.1} parent=1 // pred_fallthru
      _
    // Predicated region
    $region30: #{tpu_custom_call.1} parent=1 // pred_check
      _
    $region31: #{tpu_custom_call.1} parent=1 // pred_check_branch
      %92 = sbr.rel (0) target = $region33
    $region32: #{tpu_custom_call.1} parent=1 // pred_region
      %93 = dma.done [#allocation5], 128
    $region33: #{tpu_custom_call.1} parent=1 // pred_fallthru
      _
    %94 = vsyncpa [#allocation4], 1
    %95 = vsyncpa [#allocation5], 1

</llo_original>
